<compile_context>
chip_gen: v7x
topology: tpu7x:2x2x1
jax: 0.10.0
libtpu: 0.0.40
codegen_flags: <defaults>
</compile_context>

<pallas_src>
import jax
import jax.numpy as jnp
from jax import lax
from jax.experimental import pallas as pl
from jax.experimental.pallas import tpu as pltpu


def group_kernel(xcm_ref, xg_ref, nb_ref, ctr_ref, d_ref):
    # xcm_ref: (3, Bt, N)    channel-major xyz -> dense (Bt, N) planes
    # xg_ref : (Bt, 3, N)    batch-major xyz  -> MXU gather operand
    # nb_ref : (M, 3, Bt, G) relative neighborhood block (channel-major)
    # ctr_ref: (3, Bt, G)    sampled centers block (channel-major)
    # d_ref  : (Bt, G, N)    VMEM scratch: running squared distances
    _, Bt, N = xcm_ref.shape
    M = nb_ref.shape[0]
    G = ctr_ref.shape[2]

    x0 = xcm_ref[0].astype(jnp.float32)                          # (Bt, N)
    x1 = xcm_ref[1].astype(jnp.float32)
    x2 = xcm_ref[2].astype(jnp.float32)

    # Hoisted iotas (broadcast_in_dim is not CSE'd inside loops).
    iota_bn = lax.broadcasted_iota(jnp.int32, (Bt, N), 1)        # (Bt, N)
    iota_bg = lax.broadcasted_iota(jnp.int32, (Bt, G), 1)        # (Bt, G)
    iota_bgn = lax.broadcasted_iota(jnp.int32, (Bt, G, N), 2)    # (Bt, G, N)

    # ---------------- farthest point sampling (Bt chains jointly) -----------
    def fps_body(i, carry):
        dist, far, c0, c1, c2 = carry
        sel = iota_bn == far                                     # (Bt, N)
        cent0 = jnp.sum(jnp.where(sel, x0, 0.0), axis=-1, keepdims=True)
        cent1 = jnp.sum(jnp.where(sel, x1, 0.0), axis=-1, keepdims=True)
        cent2 = jnp.sum(jnp.where(sel, x2, 0.0), axis=-1, keepdims=True)
        at_i = iota_bg == i
        c0 = jnp.where(at_i, cent0, c0)                          # (Bt, G)
        c1 = jnp.where(at_i, cent1, c1)
        c2 = jnp.where(at_i, cent2, c2)
        d = (x0 - cent0) ** 2 + (x1 - cent1) ** 2 + (x2 - cent2) ** 2
        dist = jnp.minimum(dist, d)
        maxval = jnp.max(dist, axis=-1, keepdims=True)           # (Bt, 1)
        far = jnp.min(jnp.where(dist == maxval, iota_bn, N),
                      axis=-1, keepdims=True).astype(jnp.int32)  # (Bt, 1)
        return dist, far, c0, c1, c2

    dist0 = jnp.full((Bt, N), 1e10, jnp.float32)
    far0 = jnp.zeros((Bt, 1), jnp.int32)
    cz = jnp.zeros((Bt, G), jnp.float32)
    _, _, c0, c1, c2 = lax.fori_loop(0, G, fps_body,
                                     (dist0, far0, cz, cz, cz))

    ctr_ref[...] = jnp.stack([c0, c1, c2], axis=0).astype(ctr_ref.dtype)

    # -------- exact squared distances center -> points (one-time VPU) -------
    d_ref[...] = (x0[:, None, :] - c0[:, :, None]) ** 2
    d_ref[...] += (x1[:, None, :] - c1[:, :, None]) ** 2
    d_ref[...] += (x2[:, None, :] - c2[:, :, None]) ** 2

    xg = xg_ref[...].astype(jnp.float32)                         # (Bt, 3, N)
    inf = jnp.float32(jnp.inf)

    # ----- kNN: M iterative arg-min passes; one-hot reused for gather+mask ---
    @pl.loop(0, M)
    def _(j):
        d = d_ref[...]                                           # (Bt, G, N)
        minval = jnp.min(d, axis=-1, keepdims=True)              # (Bt, G, 1)
        first = jnp.min(jnp.where(d == minval, iota_bgn, N),
                        axis=-1, keepdims=True)                  # (Bt, G, 1)
        onehot = iota_bgn == first                               # (Bt, G, N)
        # gather selected coordinates on the MXU (contraction over N)
        g = jnp.einsum('bcn,bgn->bcg', xg, onehot.astype(jnp.float32),
                       preferred_element_type=jnp.float32)       # (Bt, 3, G)
        p0 = g[:, 0, :] - c0                                     # (Bt, G)
        p1 = g[:, 1, :] - c1
        p2 = g[:, 2, :] - c2
        nb_ref[j] = jnp.stack([p0, p1, p2], axis=0).astype(nb_ref.dtype)
        # mask the selected column so the next pass finds the next-nearest
        d_ref[...] = jnp.where(onehot, inf, d)


def _plan_blocks(B, N, G, M):
    """Pick batch tile Bt + explicit VMEM limit from the device's capacity."""
    try:
        cap = int(pltpu.get_tpu_info().vmem_capacity_bytes)
    except Exception:
        cap = 64 * 1024 * 1024          # conservative (v7x per-core VMEM)
    budget = int(cap * 0.45)

    def pad(v, m):
        return -(-v // m) * m

    def footprint(bt):
        f = 4  # f32
        in_cm = 2 * 3 * pad(bt, 8) * pad(N, 128) * f             # dbl-buffered
        in_g = 2 * bt * pad(3, 8) * pad(N, 128) * f
        out_nb = 2 * M * 3 * pad(bt, 8) * pad(G, 128) * f
        out_ct = 2 * 3 * pad(bt, 8) * pad(G, 128) * f
        d_scr = bt * pad(G, 8) * pad(N, 128) * f
        temps = 3 * bt * pad(G, 8) * pad(N, 128) * f             # loop temps
        return in_cm + in_g + out_nb + out_ct + d_scr + temps

    # Bt must divide B and keep block shapes (8,128)-legal: Bt % 8 == 0 or == B.
    cands = [bt for bt in range(1, min(B, 32) + 1)
             if B % bt == 0 and (bt % 8 == 0 or bt == B)]
    if not cands:
        cands = [B]
    # Prefer >= 2 grid steps so the parallel axis can split across 2 TCs (v7x).
    multi = [bt for bt in cands if B // bt >= 2]
    pool = multi if multi else cands
    fitting = [bt for bt in pool if footprint(bt) <= budget]
    if not fitting:
        fitting = [min(pool)]
    bt = max(fitting)
    vmem_limit = int(min(cap * 0.9,
                         max(footprint(bt) * 2 + (4 << 20), 32 << 20)))
    return bt, vmem_limit


def group_forward(x, *, num_group, group_size, out_dtype=jnp.float32):
    """x: [B, C, N] channels-first. Returns (neighborhood [B,G,M,3], center [B,G,3])."""
    B, C, N = x.shape
    assert C >= 3, "need at least xyz channels"
    G, M = num_group, group_size
    assert G <= N and M <= N, "num_group and group_size must be <= N"
    Bt, vmem_limit = _plan_blocks(B, N, G, M)

    xyz = x[:, :3, :].astype(jnp.float32)                        # (B, 3, N)
    x_cm = jnp.transpose(xyz, (1, 0, 2))                         # (3, B, N)

    nb_raw, ctr_raw = pl.pallas_call(
        group_kernel,
        out_shape=(jax.ShapeDtypeStruct((M, 3, B, G), out_dtype),
                   jax.ShapeDtypeStruct((3, B, G), out_dtype)),
        grid_spec=pltpu.PrefetchScalarGridSpec(
            num_scalar_prefetch=0,
            grid=(B // Bt,),
            in_specs=[pl.BlockSpec((3, Bt, N), lambda b: (0, b, 0)),
                      pl.BlockSpec((Bt, 3, N), lambda b: (b, 0, 0))],
            out_specs=[pl.BlockSpec((M, 3, Bt, G), lambda b: (0, 0, b, 0)),
                       pl.BlockSpec((3, Bt, G), lambda b: (0, b, 0))],
            scratch_shapes=[pltpu.VMEM((Bt, G, N), jnp.float32)],
        ),
        compiler_params=pltpu.CompilerParams(
            dimension_semantics=("parallel",),
            vmem_limit_bytes=vmem_limit),
    )(x_cm, xyz)

    neighborhood = jnp.transpose(nb_raw, (2, 3, 0, 1))           # (B, G, M, 3)
    center = jnp.transpose(ctr_raw, (1, 2, 0))                   # (B, G, 3)
    return neighborhood, center


def fps_reference(xyz, G):
    """Pure-JAX deterministic FPS (start index 0). xyz: (B, N, 3) -> (B, G, 3)."""
    B, N, _ = xyz.shape

    def fps_one(pts):
        def body(i, carry):
            dist, farthest, centers = carry
            centroid = pts[farthest]
            centers = centers.at[i].set(centroid)
            d = jnp.sum((pts - centroid) ** 2, axis=-1)
            dist = jnp.minimum(dist, d)
            farthest = jnp.argmax(dist).astype(jnp.int32)
            return dist, farthest, centers

        dist0 = jnp.full((N,), 1e10, jnp.float32)
        _, _, centers = lax.fori_loop(
            0, G, body, (dist0, jnp.int32(0), jnp.zeros((G, 3), jnp.float32)))
        return centers

    return jax.vmap(fps_one)(xyz.astype(jnp.float32))


if __name__ == "__main__":
    B, C, N = 2, 4, 64        # input layout [B, C, N], channels-first
    G, M = 8, 8               # num_group, group_size

    key = jax.random.PRNGKey(0)
    x = jax.random.normal(key, (B, C, N), dtype=jnp.float32)

    nb, ctr = group_forward(x, num_group=G, group_size=M)
    jax.block_until_ready((nb, ctr))

    assert nb.shape == (B, G, M, 3) and ctr.shape == (B, G, 3)

    # ---- validation ----
    xyz = jnp.transpose(x, (0, 2, 1))[:, :, :3]                  # (B, N, 3)

    # 1) FPS centers must match the reference (same elementwise math).
    ctr_ref = fps_reference(xyz, G)
    assert jnp.allclose(ctr, ctr_ref, atol=1e-5), "center mismatch"

    # 2) kNN check (tie-robust): every selected neighbor must be a cloud
    #    point, neighbors within a group must be distinct, and every selected
    #    distance must lie within the M smallest distances (+tolerance).
    abs_pts = nb + ctr[:, :, None, :]                            # (B, G, M, 3)
    d_member = jnp.sum((abs_pts[:, :, :, None, :]
                        - xyz[:, None, None, :, :]) ** 2, axis=-1)  # (B,G,M,N)
    assert float(jnp.max(jnp.min(d_member, axis=-1))) < 1e-6, \
        "selected point not in cloud"
    sel_idx = jnp.argmin(d_member, axis=-1)                      # (B, G, M)
    same = sel_idx[:, :, :, None] == sel_idx[:, :, None, :]
    off_diag = same & ~jnp.eye(M, dtype=bool)[None, None]
    assert not bool(jnp.any(off_diag)), "duplicate neighbor selected"
    d2_ref = jnp.sum((ctr_ref[:, :, None, :] - xyz[:, None, :, :]) ** 2,
                     axis=-1)                                    # (B, G, N)
    kth = jnp.sort(d2_ref, axis=-1)[:, :, M - 1]                 # (B, G)
    d_sel = jnp.sum(nb ** 2, axis=-1)                            # (B, G, M)
    assert bool(jnp.all(d_sel <= kth[:, :, None] + 1e-4)), \
        "non-kNN point selected"

    print("KERNEL_OK")
</pallas_src>

<mosaic_0001>
module attributes {stable_mosaic.version = 11 : i64} {
  func.func @group_kernel(%arg0: i32, %arg1: memref<3x2x64xf32, #tpu.memory_space<vmem>>, %arg2: memref<2x3x64xf32, #tpu.memory_space<vmem>>, %arg3: memref<8x3x2x8xf32, #tpu.memory_space<vmem>>, %arg4: memref<3x2x8xf32, #tpu.memory_space<vmem>>, %arg5: memref<2x8x64xf32, #tpu.memory_space<vmem>>) attributes {dimension_semantics = [#tpu.dimension_semantics<parallel>], iteration_bounds = array<i64: 1>, scalar_prefetch = 0 : i64, scratch_operands = 1 : i64, tpu.core_type = #tpu.core_type<tc>, window_params = [{transform_indices = @transform_0, window_bounds = array<i64: 3, 2, 64>}, {transform_indices = @transform_1, window_bounds = array<i64: 2, 3, 64>}, {transform_indices = @transform_2, window_bounds = array<i64: 8, 3, 2, 8>}, {transform_indices = @transform_3, window_bounds = array<i64: 3, 2, 8>}]} {
    %c0 = arith.constant 0 : index
    %c0_0 = arith.constant 0 : index
    %c0_1 = arith.constant 0 : index
    %0 = vector.load %arg1[%c0, %c0_0, %c0_1] : memref<3x2x64xf32, #tpu.memory_space<vmem>>, vector<1x2x64xf32>
    %1 = vector.shape_cast %0 : vector<1x2x64xf32> to vector<2x64xf32>
    %c1 = arith.constant 1 : index
    %c0_2 = arith.constant 0 : index
    %c0_3 = arith.constant 0 : index
    %2 = vector.load %arg1[%c1, %c0_2, %c0_3] : memref<3x2x64xf32, #tpu.memory_space<vmem>>, vector<1x2x64xf32>
    %3 = vector.shape_cast %2 : vector<1x2x64xf32> to vector<2x64xf32>
    %c2 = arith.constant 2 : index
    %c0_4 = arith.constant 0 : index
    %c0_5 = arith.constant 0 : index
    %4 = vector.load %arg1[%c2, %c0_4, %c0_5] : memref<3x2x64xf32, #tpu.memory_space<vmem>>, vector<1x2x64xf32>
    %5 = vector.shape_cast %4 : vector<1x2x64xf32> to vector<2x64xf32>
    %6 = tpu.iota {dimensions = array<i32: 1>} : vector<2x64xi32>
    %7 = tpu.iota {dimensions = array<i32: 1>} : vector<2x8xi32>
    %8 = tpu.iota {dimensions = array<i32: 2>} : vector<2x8x64xi32>
    %cst = arith.constant 1.000000e+10 : f32
    %9 = vector.broadcast %cst : f32 to vector<2x64xf32>
    %c0_i32 = arith.constant 0 : i32
    %10 = vector.broadcast %c0_i32 : i32 to vector<2x1xi32>
    %cst_6 = arith.constant 0.000000e+00 : f32
    %11 = vector.broadcast %cst_6 : f32 to vector<2x8xf32>
    %c0_i32_7 = arith.constant 0 : i32
    %c8_i32 = arith.constant 8 : i32
    %12 = arith.addi %c0_i32_7, %c8_i32 : i32
    %c1_i32 = arith.constant 1 : i32
    %13:5 = scf.for %arg6 = %c0_i32_7 to %12 step %c1_i32 iter_args(%arg7 = %9, %arg8 = %10, %arg9 = %11, %arg10 = %11, %arg11 = %11) -> (vector<2x64xf32>, vector<2x1xi32>, vector<2x8xf32>, vector<2x8xf32>, vector<2x8xf32>)  : i32 {
      %46 = vector.broadcast %arg8 : vector<2x1xi32> to vector<2x64xi32>
      %47 = arith.cmpi eq, %6, %46 : vector<2x64xi32>
      %cst_35 = arith.constant 0.000000e+00 : f32
      %48 = vector.broadcast %cst_35 : f32 to vector<2x64xf32>
      %49 = arith.select %47, %1, %48 : vector<2x64xi1>, vector<2x64xf32>
      %cst_36 = arith.constant dense<0.000000e+00> : vector<2xf32>
      %50 = vector.multi_reduction <add>, %49, %cst_36 [1] : vector<2x64xf32> to vector<2xf32>
      %51 = vector.shape_cast %50 : vector<2xf32> to vector<2x1xf32>
      %cst_37 = arith.constant 0.000000e+00 : f32
      %52 = vector.broadcast %cst_37 : f32 to vector<2x64xf32>
      %53 = arith.select %47, %3, %52 : vector<2x64xi1>, vector<2x64xf32>
      %cst_38 = arith.constant dense<0.000000e+00> : vector<2xf32>
      %54 = vector.multi_reduction <add>, %53, %cst_38 [1] : vector<2x64xf32> to vector<2xf32>
      %55 = vector.shape_cast %54 : vector<2xf32> to vector<2x1xf32>
      %cst_39 = arith.constant 0.000000e+00 : f32
      %56 = vector.broadcast %cst_39 : f32 to vector<2x64xf32>
      %57 = arith.select %47, %5, %56 : vector<2x64xi1>, vector<2x64xf32>
      %cst_40 = arith.constant dense<0.000000e+00> : vector<2xf32>
      %58 = vector.multi_reduction <add>, %57, %cst_40 [1] : vector<2x64xf32> to vector<2xf32>
      %59 = vector.shape_cast %58 : vector<2xf32> to vector<2x1xf32>
      %60 = vector.broadcast %arg6 : i32 to vector<2x8xi32>
      %61 = arith.cmpi eq, %7, %60 : vector<2x8xi32>
      %62 = vector.shape_cast %51 : vector<2x1xf32> to vector<2x1xf32>
      %63 = vector.broadcast %62 : vector<2x1xf32> to vector<2x8xf32>
      %64 = arith.select %61, %63, %arg9 : vector<2x8xi1>, vector<2x8xf32>
      %65 = vector.shape_cast %55 : vector<2x1xf32> to vector<2x1xf32>
      %66 = vector.broadcast %65 : vector<2x1xf32> to vector<2x8xf32>
      %67 = arith.select %61, %66, %arg10 : vector<2x8xi1>, vector<2x8xf32>
      %68 = vector.shape_cast %59 : vector<2x1xf32> to vector<2x1xf32>
      %69 = vector.broadcast %68 : vector<2x1xf32> to vector<2x8xf32>
      %70 = arith.select %61, %69, %arg11 : vector<2x8xi1>, vector<2x8xf32>
      %71 = vector.broadcast %51 : vector<2x1xf32> to vector<2x64xf32>
      %72 = arith.subf %1, %71 : vector<2x64xf32>
      %73 = arith.mulf %72, %72 : vector<2x64xf32>
      %74 = vector.broadcast %55 : vector<2x1xf32> to vector<2x64xf32>
      %75 = arith.subf %3, %74 : vector<2x64xf32>
      %76 = arith.mulf %75, %75 : vector<2x64xf32>
      %77 = arith.addf %73, %76 : vector<2x64xf32>
      %78 = vector.broadcast %59 : vector<2x1xf32> to vector<2x64xf32>
      %79 = arith.subf %5, %78 : vector<2x64xf32>
      %80 = arith.mulf %79, %79 : vector<2x64xf32>
      %81 = arith.addf %77, %80 : vector<2x64xf32>
      %82 = arith.minimumf %arg7, %81 : vector<2x64xf32>
      %cst_41 = arith.constant dense<0xFF800000> : vector<2xf32>
      %83 = vector.multi_reduction <maximumf>, %82, %cst_41 [1] : vector<2x64xf32> to vector<2xf32>
      %84 = vector.shape_cast %83 : vector<2xf32> to vector<2x1xf32>
      %85 = vector.broadcast %84 : vector<2x1xf32> to vector<2x64xf32>
      %86 = arith.cmpf oeq, %82, %85 : vector<2x64xf32>
      %c64_i32 = arith.constant 64 : i32
      %87 = vector.broadcast %c64_i32 : i32 to vector<2x64xi32>
      %88 = arith.select %86, %6, %87 : vector<2x64xi1>, vector<2x64xi32>
      %cst_42 = arith.constant dense<2147483647> : vector<2xi32>
      %89 = vector.multi_reduction <minsi>, %88, %cst_42 [1] : vector<2x64xi32> to vector<2xi32>
      %90 = vector.shape_cast %89 : vector<2xi32> to vector<2x1xi32>
      scf.yield %82, %90, %64, %67, %70 : vector<2x64xf32>, vector<2x1xi32>, vector<2x8xf32>, vector<2x8xf32>, vector<2x8xf32>
    }
    %c8_i32_8 = arith.constant 8 : i32
    %14 = vector.shape_cast %13#2 : vector<2x8xf32> to vector<1x2x8xf32>
    %15 = vector.shape_cast %13#3 : vector<2x8xf32> to vector<1x2x8xf32>
    %16 = vector.shape_cast %13#4 : vector<2x8xf32> to vector<1x2x8xf32>
    %17 = tpu.concatenate %14, %15, %16 in 0 : vector<1x2x8xf32>, vector<1x2x8xf32>, vector<1x2x8xf32> -> vector<3x2x8xf32>
    %c0_9 = arith.constant 0 : index
    %c0_10 = arith.constant 0 : index
    %c0_11 = arith.constant 0 : index
    %18 = vector.load %arg4[%c0_9, %c0_10, %c0_11] : memref<3x2x8xf32, #tpu.memory_space<vmem>>, vector<3x2x8xf32>
    tpu.vector_store %arg4[%c0_9, %c0_10, %c0_11], %17 {strides = array<i32>} : memref<3x2x8xf32, #tpu.memory_space<vmem>>, vector<3x2x8xf32>,
    %19 = vector.shape_cast %1 : vector<2x64xf32> to vector<2x1x64xf32>
    %20 = vector.shape_cast %13#2 : vector<2x8xf32> to vector<2x8x1xf32>
    %21 = vector.broadcast %19 : vector<2x1x64xf32> to vector<2x8x64xf32>
    %22 = vector.broadcast %20 : vector<2x8x1xf32> to vector<2x8x64xf32>
    %23 = arith.subf %21, %22 : vector<2x8x64xf32>
    %24 = arith.mulf %23, %23 : vector<2x8x64xf32>
    %c0_12 = arith.constant 0 : index
    %c0_13 = arith.constant 0 : index
    %c0_14 = arith.constant 0 : index
    %25 = vector.load %arg5[%c0_12, %c0_13, %c0_14] : memref<2x8x64xf32, #tpu.memory_space<vmem>>, vector<2x8x64xf32>
    tpu.vector_store %arg5[%c0_12, %c0_13, %c0_14], %24 {strides = array<i32>} : memref<2x8x64xf32, #tpu.memory_space<vmem>>, vector<2x8x64xf32>,
    %c0_15 = arith.constant 0 : index
    %c0_16 = arith.constant 0 : index
    %c0_17 = arith.constant 0 : index
    %26 = vector.load %arg5[%c0_15, %c0_16, %c0_17] : memref<2x8x64xf32, #tpu.memory_space<vmem>>, vector<2x8x64xf32>
    %27 = vector.shape_cast %3 : vector<2x64xf32> to vector<2x1x64xf32>
    %28 = vector.shape_cast %13#3 : vector<2x8xf32> to vector<2x8x1xf32>
    %29 = vector.broadcast %27 : vector<2x1x64xf32> to vector<2x8x64xf32>
    %30 = vector.broadcast %28 : vector<2x8x1xf32> to vector<2x8x64xf32>
    %31 = arith.subf %29, %30 : vector<2x8x64xf32>
    %32 = arith.mulf %31, %31 : vector<2x8x64xf32>
    %33 = arith.addf %26, %32 : vector<2x8x64xf32>
    %c0_18 = arith.constant 0 : index
    %c0_19 = arith.constant 0 : index
    %c0_20 = arith.constant 0 : index
    %34 = vector.load %arg5[%c0_18, %c0_19, %c0_20] : memref<2x8x64xf32, #tpu.memory_space<vmem>>, vector<2x8x64xf32>
    tpu.vector_store %arg5[%c0_18, %c0_19, %c0_20], %33 {strides = array<i32>} : memref<2x8x64xf32, #tpu.memory_space<vmem>>, vector<2x8x64xf32>,
    %c0_21 = arith.constant 0 : index
    %c0_22 = arith.constant 0 : index
    %c0_23 = arith.constant 0 : index
    %35 = vector.load %arg5[%c0_21, %c0_22, %c0_23] : memref<2x8x64xf32, #tpu.memory_space<vmem>>, vector<2x8x64xf32>
    %36 = vector.shape_cast %5 : vector<2x64xf32> to vector<2x1x64xf32>
    %37 = vector.shape_cast %13#4 : vector<2x8xf32> to vector<2x8x1xf32>
    %38 = vector.broadcast %36 : vector<2x1x64xf32> to vector<2x8x64xf32>
    %39 = vector.broadcast %37 : vector<2x8x1xf32> to vector<2x8x64xf32>
    %40 = arith.subf %38, %39 : vector<2x8x64xf32>
    %41 = arith.mulf %40, %40 : vector<2x8x64xf32>
    %42 = arith.addf %35, %41 : vector<2x8x64xf32>
    %c0_24 = arith.constant 0 : index
    %c0_25 = arith.constant 0 : index
    %c0_26 = arith.constant 0 : index
    %43 = vector.load %arg5[%c0_24, %c0_25, %c0_26] : memref<2x8x64xf32, #tpu.memory_space<vmem>>, vector<2x8x64xf32>
    tpu.vector_store %arg5[%c0_24, %c0_25, %c0_26], %42 {strides = array<i32>} : memref<2x8x64xf32, #tpu.memory_space<vmem>>, vector<2x8x64xf32>,
    %c0_27 = arith.constant 0 : index
    %c0_28 = arith.constant 0 : index
    %c0_29 = arith.constant 0 : index
    %44 = vector.load %arg2[%c0_27, %c0_28, %c0_29] : memref<2x3x64xf32, #tpu.memory_space<vmem>>, vector<2x3x64xf32>
    %cst_30 = arith.constant 0x7F800000 : f32
    %c0_i32_31 = arith.constant 0 : i32
    %c8_i32_32 = arith.constant 8 : i32
    %45 = arith.addi %c0_i32_31, %c8_i32_32 : i32
    %c1_i32_33 = arith.constant 1 : i32
    scf.for %arg6 = %c0_i32_31 to %45 step %c1_i32_33  : i32 {
      %c1_i32_35 = arith.constant 1 : i32
      %46 = arith.muli %arg6, %c1_i32_35 : i32
      %c0_i32_36 = arith.constant 0 : i32
      %47 = arith.addi %c0_i32_36, %46 : i32
      %c0_37 = arith.constant 0 : index
      %c0_38 = arith.constant 0 : index
      %c0_39 = arith.constant 0 : index
      %48 = vector.load %arg5[%c0_37, %c0_38, %c0_39] : memref<2x8x64xf32, #tpu.memory_space<vmem>>, vector<2x8x64xf32>
      %cst_40 = arith.constant dense<0x7F800000> : vector<2x8xf32>
      %49 = vector.multi_reduction <minimumf>, %48, %cst_40 [2] : vector<2x8x64xf32> to vector<2x8xf32>
      %50 = vector.shape_cast %49 : vector<2x8xf32> to vector<2x8x1xf32>
      %51 = vector.broadcast %50 : vector<2x8x1xf32> to vector<2x8x64xf32>
      %52 = arith.cmpf oeq, %48, %51 : vector<2x8x64xf32>
      %c64_i32 = arith.constant 64 : i32
      %53 = vector.broadcast %c64_i32 : i32 to vector<2x8x64xi32>
      %54 = arith.select %52, %8, %53 : vector<2x8x64xi1>, vector<2x8x64xi32>
      %cst_41 = arith.constant dense<2147483647> : vector<2x8xi32>
      %55 = vector.multi_reduction <minsi>, %54, %cst_41 [2] : vector<2x8x64xi32> to vector<2x8xi32>
      %56 = vector.shape_cast %55 : vector<2x8xi32> to vector<2x8x1xi32>
      %57 = vector.broadcast %56 : vector<2x8x1xi32> to vector<2x8x64xi32>
      %58 = arith.cmpi eq, %8, %57 : vector<2x8x64xi32>
      %59 = arith.extui %58 : vector<2x8x64xi1> to vector<2x8x64xi32>
      %60 = arith.sitofp %59 : vector<2x8x64xi32> to vector<2x8x64xf32>
      "tpu.trace_start"() <{level = 10 : i32, message = "bcn,bgn->bcg"}> : () -> ()
      %cst_42 = arith.constant dense<0.000000e+00> : vector<2x3x8xf32>
      %61 = tpu.matmul %44, %60, %cst_42 {dimension_numbers = #tpu.dot_dimension_numbers<[2], [2], [1], [1], [0, 0, 0, 1, 1, 1], [0], [0]>} : vector<2x3x64xf32>, vector<2x8x64xf32>, vector<2x3x8xf32> -> vector<2x3x8xf32>
      "tpu.trace_stop"() : () -> ()
      %62 = vector.extract_strided_slice %61 {offsets = [0, 0, 0], sizes = [2, 1, 8], strides = [1, 1, 1]} : vector<2x3x8xf32> to vector<2x1x8xf32>
      %63 = vector.shape_cast %62 : vector<2x1x8xf32> to vector<2x8xf32>
      %64 = arith.subf %63, %13#2 : vector<2x8xf32>
      %65 = vector.extract_strided_slice %61 {offsets = [0, 1, 0], sizes = [2, 1, 8], strides = [1, 1, 1]} : vector<2x3x8xf32> to vector<2x1x8xf32>
      %66 = vector.shape_cast %65 : vector<2x1x8xf32> to vector<2x8xf32>
      %67 = arith.subf %66, %13#3 : vector<2x8xf32>
      %68 = vector.extract_strided_slice %61 {offsets = [0, 2, 0], sizes = [2, 1, 8], strides = [1, 1, 1]} : vector<2x3x8xf32> to vector<2x1x8xf32>
      %69 = vector.shape_cast %68 : vector<2x1x8xf32> to vector<2x8xf32>
      %70 = arith.subf %69, %13#4 : vector<2x8xf32>
      %71 = vector.shape_cast %64 : vector<2x8xf32> to vector<1x2x8xf32>
      %72 = vector.shape_cast %67 : vector<2x8xf32> to vector<1x2x8xf32>
      %73 = vector.shape_cast %70 : vector<2x8xf32> to vector<1x2x8xf32>
      %74 = tpu.concatenate %71, %72, %73 in 0 : vector<1x2x8xf32>, vector<1x2x8xf32>, vector<1x2x8xf32> -> vector<3x2x8xf32>
      %75 = arith.index_cast %47 : i32 to index
      %c0_43 = arith.constant 0 : index
      %c0_44 = arith.constant 0 : index
      %c0_45 = arith.constant 0 : index
      %76 = vector.load %arg3[%75, %c0_43, %c0_44, %c0_45] : memref<8x3x2x8xf32, #tpu.memory_space<vmem>>, vector<1x3x2x8xf32>
      %77 = vector.shape_cast %76 : vector<1x3x2x8xf32> to vector<3x2x8xf32>
      %78 = vector.shape_cast %74 : vector<3x2x8xf32> to vector<1x3x2x8xf32>
      tpu.vector_store %arg3[%75, %c0_43, %c0_44, %c0_45], %78 {strides = array<i32>} : memref<8x3x2x8xf32, #tpu.memory_space<vmem>>, vector<1x3x2x8xf32>,
      %79 = vector.broadcast %cst_30 : f32 to vector<2x8x64xf32>
      %80 = arith.select %58, %79, %48 : vector<2x8x64xi1>, vector<2x8x64xf32>
      %c0_46 = arith.constant 0 : index
      %c0_47 = arith.constant 0 : index
      %c0_48 = arith.constant 0 : index
      %81 = vector.load %arg5[%c0_46, %c0_47, %c0_48] : memref<2x8x64xf32, #tpu.memory_space<vmem>>, vector<2x8x64xf32>
      tpu.vector_store %arg5[%c0_46, %c0_47, %c0_48], %80 {strides = array<i32>} : memref<2x8x64xf32, #tpu.memory_space<vmem>>, vector<2x8x64xf32>,
    }
    %c8_i32_34 = arith.constant 8 : i32
    return
  }
  func.func @transform_0(%arg0: i32) -> (i32, i32, i32) {
    %c0_i32 = arith.constant 0 : i32
    %c0_i32_0 = arith.constant 0 : i32
    %c0_i32_1 = arith.constant 0 : i32
    return %c0_i32, %arg0, %c0_i32_0 : i32, i32, i32
  }
  func.func @transform_1(%arg0: i32) -> (i32, i32, i32) {
    %c0_i32 = arith.constant 0 : i32
    %c0_i32_0 = arith.constant 0 : i32
    %c0_i32_1 = arith.constant 0 : i32
    return %arg0, %c0_i32, %c0_i32_0 : i32, i32, i32
  }
  func.func @transform_2(%arg0: i32) -> (i32, i32, i32, i32) {
    %c0_i32 = arith.constant 0 : i32
    %c0_i32_0 = arith.constant 0 : i32
    %c0_i32_1 = arith.constant 0 : i32
    %c0_i32_2 = arith.constant 0 : i32
    return %c0_i32, %c0_i32_0, %arg0, %c0_i32_1 : i32, i32, i32, i32
  }
  func.func @transform_3(%arg0: i32) -> (i32, i32, i32) {
    %c0_i32 = arith.constant 0 : i32
    %c0_i32_0 = arith.constant 0 : i32
    %c0_i32_1 = arith.constant 0 : i32
    return %c0_i32, %arg0, %c0_i32_0 : i32, i32, i32
  }
}

</mosaic_0001>

<llo_original>
// kernel: tpu_custom_call.1
$region0: #{tpu_custom_call.1}
  #allocation0 [shape = 'u32[]', space=smem, size = 0x4, offset = 0x4, fixed_abs, tag = 'smem constant byte address 0x4 - core index']
  #allocation1 [shape = 'u32[144,128]{1,0:T(1,128)}', space=vmem, size = 0x12000, scoped, tag = 'internal scratch']
  #allocation2 [shape = 'f32[2,8,64]{2,1,0:T(8,128)}', space=vmem, size = 0x2000, scoped, tag = 'scratch operand']
  %s0 = inlined_call_operand.vmem [shape: f32[3,2,64], index: 0, kind: input, shape index: {}]
  %s1 = inlined_call_operand.vmem [shape: f32[2,3,64], index: 1, kind: input, shape index: {}]
  %s2 = inlined_call_operand.hbm [shape: f32[8,3,2,8], index: 2, kind: output, shape index: {0}]
  %s3 = inlined_call_operand.hbm [shape: f32[3,2,8], index: 3, kind: output, shape index: {1}]
  %4 = xla_tuple %s2, %s3
  %s5 = sld [smem:[#allocation0]]
  $region40: #{tpu_custom_call.1} parent=0
    _
  %s7 = ssub.s32 1, %s5
  %s8 = scalar_select 0, %s7, %s5
  $region1: #{tpu_custom_call.1} parent=0
    #allocation3 [shape = 'u8[24576]{0}', space=vmem, size = 0x6000, scoped, tag = 'output window, operand 0, single buffered']
    #allocation4 [shape = 's32[1]{0}', space=sflag, size = 0x4, scoped, tag = 'scoped memory for tpu_custom_call.1']
    #allocation5 [shape = 'u8[3072]{0}', space=vmem, size = 0xc00, scoped, tag = 'output window, operand 1, single buffered']
    #allocation6 [shape = 's32[1]{0}', space=sflag, size = 0x4, scoped, tag = 'scoped memory for tpu_custom_call.1']
    %9 = vsyncpa [#allocation4], 0
    %10 = vsyncpa [#allocation6], 0
    // Predicated region
    $region2: #{tpu_custom_call.1} parent=1 // pred_check
      _
    $region3: #{tpu_custom_call.1} parent=1 // pred_check_branch
      %12 = sbr.rel (0) target = $region5
    $region4: #{tpu_custom_call.1} parent=1 // pred_region
      _
    $region5: #{tpu_custom_call.1} parent=1 // pred_fallthru
      _
    // Predicated region
    $region6: #{tpu_custom_call.1} parent=1 // pred_check
      _
    $region7: #{tpu_custom_call.1} parent=1 // pred_check_branch
      %14 = sbr.rel (0) target = $region9
    $region8: #{tpu_custom_call.1} parent=1 // pred_region
      _
    $region9: #{tpu_custom_call.1} parent=1 // pred_fallthru
      _
    %v15 = vld [vmem:[%s0] sm:$0x3]
    %s16 = scalar_lea.vmem %s0, 2
    %v17 = vld [vmem:[%s16] sm:$0x3]
    %s18 = scalar_lea.vmem %s0, 4
    %v19 = vld [vmem:[%s18] sm:$0x3]
    %v20 = vlaneseq
    %v21 = vand.u32 %v20, 127
    loop: start=0, step=1, limit=8
    $region10: #{tpu_custom_call.1} parent=1 // loop_pre_header
      _
    $region11: #{tpu_custom_call.1} parent=1 // loop_header
      %s23 = sphi 0, %s27
      %p24 = scmp.ge.s32.totalorder %s23, 8
      %v28 = vphi 1e+10, %v60
      %v29 = vphi 0, %v80
      %v30 = vphi 0.0, %v49
      %v31 = vphi 0.0, %v50
      %v32 = vphi 0.0, %v51
    $region12: #{tpu_custom_call.1} parent=1 // loop_header_branch
      %26 = sbr.rel (%p24) target = $region16
    $region13: #{tpu_custom_call.1} parent=1 // loop_body
      %vm33 = vcmp.eq.s32.totalorder %v21, %v29
      %v34 = vsel %vm33, %v15, 0.0
      %vm35 = vcmask 517120
      %v36 = vsel %vm35, %v34, 0.0
      %37 = vadd.xlane.f32.xlu0 %v36
      %v38 = vpop.xlane.xlu0 %37
      %v39 = vsel %vm33, %v17, 0.0
      %v40 = vsel %vm35, %v39, 0.0
      %41 = vadd.xlane.f32.xlu0 %v40
      %v42 = vpop.xlane.xlu0 %41
      %v43 = vsel %vm33, %v19, 0.0
      %v44 = vsel %vm35, %v43, 0.0
      %45 = vadd.xlane.f32.xlu0 %v44
      %v46 = vpop.xlane.xlu0 %45
      %v47 = vstv %s23
      %vm48 = vcmp.eq.s32.totalorder %v21, %v47
      %v49 = vsel %vm48, %v38, %v30
      %v50 = vsel %vm48, %v42, %v31
      %v51 = vsel %vm48, %v46, %v32
      %v52 = vsub.f32 %v15, %v38
      %v53 = vmul.f32 %v52, %v52
      %v54 = vsub.f32 %v17, %v42
      %v55 = vmul.f32 %v54, %v54
      %v56 = vadd.f32 %v53, %v55
      %v57 = vsub.f32 %v19, %v46
      %v58 = vmul.f32 %v57, %v57
      %v59 = vadd.f32 %v56, %v58
      %v60 = vmin.f32 %v28, %v59
      %v61 = vsel %vm35, %v60, -inf
      %62 = vmax.xlane.f32.xlu0 %v61
      %v63 = vpop.xlane.xlu0 %62
      %vm64 = vcmp.eq.f32.partialorder %v60, %v63
      %v65 = vsel %vm64, %v21, 64
      %v66 = vsel %vm35, %v65, 2147483647
      %v67 = vand.u32 %v66, 65535
      %v68 = vshra.s32 %v66, 16
      %v69 = vcvt.s32.f32 %v67
      %v70 = vcvt.s32.f32 %v68
      %71 = vmin.xlane.f32.xlu0 %v70
      %v72 = vpop.xlane.xlu0 %71
      %vm73 = vcmp.eq.f32.partialorder %v70, %v72
      %v74 = vsel %vm73, %v69, inf
      %75 = vmin.xlane.f32.xlu0 %v74
      %v76 = vpop.xlane.xlu0 %75
      %v77 = vcvt.f32.s32 %v76
      %v78 = vcvt.f32.s32 %v72
      %v79 = vshll.u32 %v78, 16
      %v80 = vadd.s32 %v79, %v77
    $region14: #{tpu_custom_call.1} parent=1 // loop_footer
      %s27 = sadd.s32 1, %s23
    $region15: #{tpu_custom_call.1} parent=1 // loop_footer_branch
      %22 = sbr.rel target = $region11
    $region16: #{tpu_custom_call.1} parent=1 // loop_exit
      _
    %vm81 = vcmask 58368
    %82 = vst.msk [vmem:[#allocation5] sm:$0x3] %vm81, %v30
    %83 = vst.msk [vmem:[#allocation5 + $0x2] sm:$0x3] %vm81, %v31
    %84 = vst.msk [vmem:[#allocation5 + $0x4] sm:$0x3] %vm81, %v32
    %v87 = vunpack.c.l.s4 1966171168
    %v88 = vunpack.c.0.s8 %v87
    %v89 = vlaneseq
    %v90 = vshrl.u32 %v89, 7
    %v91 = vsub.s32 %v88, %v90
    %v92 = vrot.slane %v15, %v91
    %v93 = vcombine.high %v92, %v92
    %v95 = vunpack.c.l.s4 1966171168
    %v96 = vunpack.c.0.s8 %v95
    %v97 = vlaneseq
    %v98 = vshrl.u32 %v97, 7
    %v99 = vsub.s32 %v96, %v98
    %v100 = vrot.slane %v92, %v99
    %v102 = vunpack.c.l.s4 1966171168
    %v103 = vunpack.c.0.s8 %v102
    %v104 = vlaneseq
    %v105 = vshrl.u32 %v104, 7
    %v106 = vsub.s32 %v103, %v105
    %v107 = vrot.slane %v93, %v106
    %v108 = vlaneseq
    %v109 = vshrl.u32 %v108, 7
    %v110 = vsub.s32 0, %v109
    %v111 = vrot.slane %v30, %v110
    %113 = vbcast.lane.b32.xlu0 %v111, 256
    %v114 = vpop.permute.xlu0 %113
    %v115 = vlaneseq
    %v116 = vshrl.u32 %v115, 7
    %v117 = vsub.s32 1, %v116
    %v118 = vrot.slane %v30, %v117
    %120 = vbcast.lane.b32.xlu0 %v118, 256
    %v121 = vpop.permute.xlu0 %120
    %v122 = vlaneseq
    %v123 = vshrl.u32 %v122, 7
    %v124 = vsub.s32 0, %v123
    %v125 = vrot.slane %v100, %v124
    %v126 = vlaneseq
    %v127 = vshrl.u32 %v126, 7
    %v128 = vsub.s32 0, %v127
    %v129 = vrot.slane %v107, %v128
    %v132 = vsub.f32 %v125, %v114
    %v133 = vsub.f32 %v129, %v121
    %v134 = vmul.f32 %v132, %v132
    %v135 = vmul.f32 %v133, %v133
    %vm136 = vcmask 523264
    %137 = vst.msk [vmem:[#allocation2] sm:$0xff] %vm136, %v134
    %138 = vst.msk [vmem:[#allocation2 + $0x8] sm:$0xff] %vm136, %v135
    %v139 = vld [vmem:[#allocation2] sm:$0xff]
    %v140 = vld [vmem:[#allocation2 + $0x8] sm:$0xff]
    %v143 = vunpack.c.l.s4 1966171168
    %v144 = vunpack.c.0.s8 %v143
    %v145 = vlaneseq
    %v146 = vshrl.u32 %v145, 7
    %v147 = vsub.s32 %v144, %v146
    %v148 = vrot.slane %v17, %v147
    %v149 = vcombine.high %v148, %v148
    %v151 = vunpack.c.l.s4 1966171168
    %v152 = vunpack.c.0.s8 %v151
    %v153 = vlaneseq
    %v154 = vshrl.u32 %v153, 7
    %v155 = vsub.s32 %v152, %v154
    %v156 = vrot.slane %v148, %v155
    %v158 = vunpack.c.l.s4 1966171168
    %v159 = vunpack.c.0.s8 %v158
    %v160 = vlaneseq
    %v161 = vshrl.u32 %v160, 7
    %v162 = vsub.s32 %v159, %v161
    %v163 = vrot.slane %v149, %v162
    %v164 = vlaneseq
    %v165 = vshrl.u32 %v164, 7
    %v166 = vsub.s32 0, %v165
    %v167 = vrot.slane %v31, %v166
    %169 = vbcast.lane.b32.xlu0 %v167, 256
    %v170 = vpop.permute.xlu0 %169
    %v171 = vlaneseq
    %v172 = vshrl.u32 %v171, 7
    %v173 = vsub.s32 1, %v172
    %v174 = vrot.slane %v31, %v173
    %176 = vbcast.lane.b32.xlu0 %v174, 256
    %v177 = vpop.permute.xlu0 %176
    %v178 = vlaneseq
    %v179 = vshrl.u32 %v178, 7
    %v180 = vsub.s32 0, %v179
    %v181 = vrot.slane %v156, %v180
    %v182 = vlaneseq
    %v183 = vshrl.u32 %v182, 7
    %v184 = vsub.s32 0, %v183
    %v185 = vrot.slane %v163, %v184
    %v188 = vsub.f32 %v181, %v170
    %v189 = vsub.f32 %v185, %v177
    %v190 = vmul.f32 %v188, %v188
    %v191 = vmul.f32 %v189, %v189
    %v192 = vadd.f32 %v139, %v190
    %v193 = vadd.f32 %v140, %v191
    %194 = vst.msk [vmem:[#allocation2] sm:$0xff] %vm136, %v192
    %195 = vst.msk [vmem:[#allocation2 + $0x8] sm:$0xff] %vm136, %v193
    %v196 = vld [vmem:[#allocation2] sm:$0xff]
    %v197 = vld [vmem:[#allocation2 + $0x8] sm:$0xff]
    %v200 = vunpack.c.l.s4 1966171168
    %v201 = vunpack.c.0.s8 %v200
    %v202 = vlaneseq
    %v203 = vshrl.u32 %v202, 7
    %v204 = vsub.s32 %v201, %v203
    %v205 = vrot.slane %v19, %v204
    %v206 = vcombine.high %v205, %v205
    %v208 = vunpack.c.l.s4 1966171168
    %v209 = vunpack.c.0.s8 %v208
    %v210 = vlaneseq
    %v211 = vshrl.u32 %v210, 7
    %v212 = vsub.s32 %v209, %v211
    %v213 = vrot.slane %v205, %v212
    %v215 = vunpack.c.l.s4 1966171168
    %v216 = vunpack.c.0.s8 %v215
    %v217 = vlaneseq
    %v218 = vshrl.u32 %v217, 7
    %v219 = vsub.s32 %v216, %v218
    %v220 = vrot.slane %v206, %v219
    %v221 = vlaneseq
    %v222 = vshrl.u32 %v221, 7
    %v223 = vsub.s32 0, %v222
    %v224 = vrot.slane %v32, %v223
    %226 = vbcast.lane.b32.xlu0 %v224, 256
    %v227 = vpop.permute.xlu0 %226
    %v228 = vlaneseq
    %v229 = vshrl.u32 %v228, 7
    %v230 = vsub.s32 1, %v229
    %v231 = vrot.slane %v32, %v230
    %233 = vbcast.lane.b32.xlu0 %v231, 256
    %v234 = vpop.permute.xlu0 %233
    %v235 = vlaneseq
    %v236 = vshrl.u32 %v235, 7
    %v237 = vsub.s32 0, %v236
    %v238 = vrot.slane %v213, %v237
    %v239 = vlaneseq
    %v240 = vshrl.u32 %v239, 7
    %v241 = vsub.s32 0, %v240
    %v242 = vrot.slane %v220, %v241
    %v245 = vsub.f32 %v238, %v227
    %v246 = vsub.f32 %v242, %v234
    %v247 = vmul.f32 %v245, %v245
    %v248 = vmul.f32 %v246, %v246
    %v249 = vadd.f32 %v196, %v247
    %v250 = vadd.f32 %v197, %v248
    %251 = vst.msk [vmem:[#allocation2] sm:$0xff] %vm136, %v249
    %252 = vst.msk [vmem:[#allocation2 + $0x8] sm:$0xff] %vm136, %v250
    %v253 = vld [vmem:[%s1] sm:$0x7]
    %v254 = vld [vmem:[%s1 + $0x4] sm:$0x7]
    loop: start=0, step=1, limit=8
    $region17: #{tpu_custom_call.1} parent=1 // loop_pre_header
      _
    $region18: #{tpu_custom_call.1} parent=1 // loop_header
      %s256 = sphi 0, %s260
      %p257 = scmp.ge.s32.totalorder %s256, 8
    $region19: #{tpu_custom_call.1} parent=1 // loop_header_branch
      %259 = sbr.rel (%p257) target = $region23
    $region20: #{tpu_custom_call.1} parent=1 // loop_body
      %v261 = vld [vmem:[#allocation2] sm:$0xff]
      %v262 = vld [vmem:[#allocation2 + $0x8] sm:$0xff]
      %v263 = vsel %vm136, %v261, inf
      %264 = vmin.xlane.f32.xlu0 %v263
      %v265 = vpop.xlane.xlu0 %264
      %v266 = vsel %vm136, %v262, inf
      %267 = vmin.xlane.f32.xlu0 %v266
      %v268 = vpop.xlane.xlu0 %267
      %vm269 = vcmp.eq.f32.partialorder %v261, %v265
      %vm270 = vcmp.eq.f32.partialorder %v262, %v268
      %v271 = vsel %vm269, %v21, 64
      %v272 = vsel %vm270, %v21, 64
      %v273 = vsel %vm136, %v271, 2147483647
      %v274 = vand.u32 %v273, 65535
      %v275 = vshra.s32 %v273, 16
      %v276 = vcvt.s32.f32 %v274
      %v277 = vcvt.s32.f32 %v275
      %278 = vmin.xlane.f32.xlu0 %v277
      %v279 = vpop.xlane.xlu0 %278
      %vm280 = vcmp.eq.f32.partialorder %v277, %v279
      %v281 = vsel %vm280, %v276, inf
      %282 = vmin.xlane.f32.xlu0 %v281
      %v283 = vpop.xlane.xlu0 %282
      %v284 = vcvt.f32.s32 %v283
      %v285 = vcvt.f32.s32 %v279
      %v286 = vshll.u32 %v285, 16
      %v287 = vadd.s32 %v286, %v284
      %v288 = vsel %vm136, %v272, 2147483647
      %v289 = vand.u32 %v288, 65535
      %v290 = vshra.s32 %v288, 16
      %v291 = vcvt.s32.f32 %v289
      %v292 = vcvt.s32.f32 %v290
      %293 = vmin.xlane.f32.xlu0 %v292
      %v294 = vpop.xlane.xlu0 %293
      %vm295 = vcmp.eq.f32.partialorder %v292, %v294
      %v296 = vsel %vm295, %v291, inf
      %297 = vmin.xlane.f32.xlu0 %v296
      %v298 = vpop.xlane.xlu0 %297
      %v299 = vcvt.f32.s32 %v298
      %v300 = vcvt.f32.s32 %v294
      %v301 = vshll.u32 %v300, 16
      %v302 = vadd.s32 %v301, %v299
      %vm303 = vcmp.eq.s32.totalorder %v21, %v287
      %vm304 = vcmp.eq.s32.totalorder %v21, %v302
      %v305 = vsel %vm303, 1, 0
      %v306 = vsel %vm304, 1, 0
      %v307 = vcvt.s32.f32 %v305
      %v308 = vcvt.s32.f32 %v306
      %v310 = vsel %vm136, %v253, 0
      %v313 = vsel %vm136, %v307, 0
      %315 = vmatprep.subr.mxu0 0.0
      %316 = vmatpush1.xpose.msra.mxu0 %v313
      %317 = vmatprep.subr.mxu0 0.0
      %318 = vmatpush1.xpose.msra.mxu0 0.0
      %319 = vmatprep.subr.mxu0 0.0
      %320 = vmatpush1.xpose.msra.mxu0 0.0
      %321 = vmatprep.subr.mxu0 0.0
      %322 = vmatpush1.xpose.msra.mxu0 0.0
      %323 = vmatprep.subr.mxu0 0.0
      %324 = vmatpush1.xpose.msra.mxu0 0.0
      %325 = vmatprep.subr.mxu0 0.0
      %326 = vmatpush1.xpose.msra.mxu0 0.0
      %327 = vmatprep.subr.mxu0 0.0
      %328 = vmatpush1.xpose.msra.mxu0 0.0
      %329 = vmatprep.subr.mxu0 0.0
      %330 = vmatpush1.xpose.msra.mxu0 0.0
      %331 = vmatprep.subr.mxu0 0.0
      %332 = vmatpush1.xpose.msra.mxu0 0.0
      %333 = vmatprep.subr.mxu0 0.0
      %334 = vmatpush1.xpose.msra.mxu0 0.0
      %335 = vmatprep.subr.mxu0 0.0
      %336 = vmatpush1.xpose.msra.mxu0 0.0
      %337 = vmatprep.subr.mxu0 0.0
      %338 = vmatpush1.xpose.msra.mxu0 0.0
      %339 = vmatprep.subr.mxu0 0.0
      %340 = vmatpush1.xpose.msra.mxu0 0.0
      %341 = vmatprep.subr.mxu0 0.0
      %342 = vmatpush1.xpose.msra.mxu0 0.0
      %343 = vmatprep.subr.mxu0 0.0
      %344 = vmatpush1.xpose.msra.mxu0 0.0
      %345 = vmatprep.subr.mxu0 0.0
      %346 = vmatpush1.xpose.msra.mxu0 0.0
      %347 = vmatprep.subr.mxu0 0.0
      %348 = vmatpush1.xpose.msra.mxu0 0.0
      %349 = vmatprep.subr.mxu0 0.0
      %350 = vmatpush1.xpose.msra.mxu0 0.0
      %351 = vmatprep.subr.mxu0 0.0
      %352 = vmatpush1.xpose.msra.mxu0 0.0
      %353 = vmatprep.subr.mxu0 0.0
      %354 = vmatpush1.xpose.msra.mxu0 0.0
      %355 = vmatprep.subr.mxu0 0.0
      %356 = vmatpush1.xpose.msra.mxu0 0.0
      %357 = vmatprep.subr.mxu0 0.0
      %358 = vmatpush1.xpose.msra.mxu0 0.0
      %359 = vmatprep.subr.mxu0 0.0
      %360 = vmatpush1.xpose.msra.mxu0 0.0
      %361 = vmatprep.subr.mxu0 0.0
      %362 = vmatpush1.xpose.msra.mxu0 0.0
      %363 = vmatprep.subr.mxu0 0.0
      %364 = vmatpush1.xpose.msra.mxu0 0.0
      %365 = vmatprep.subr.mxu0 0.0
      %366 = vmatpush1.xpose.msra.mxu0 0.0
      %367 = vmatprep.subr.mxu0 0.0
      %368 = vmatpush1.xpose.msra.mxu0 0.0
      %369 = vmatprep.subr.mxu0 0.0
      %370 = vmatpush1.xpose.msra.mxu0 0.0
      %371 = vmatprep.subr.mxu0 0.0
      %372 = vmatpush1.xpose.msra.mxu0 0.0
      %373 = vmatprep.subr.mxu0 0.0
      %374 = vmatpush1.xpose.msra.mxu0 0.0
      %375 = vmatprep.subr.mxu0 0.0
      %376 = vmatpush1.xpose.msra.mxu0 0.0
      %377 = vmatprep.subr.mxu0 0.0
      %378 = vmatpush1.xpose.msra.mxu0 0.0
      %379 = vmatprep.mubr.f32.mxu0 0.0
      %380 = vmatmul.mubr.f32.gmra.mrb[0].mxu0 %v310
      %v381 = vpop.f32.mrb[0].mxu0
      %v382 = vadd.f32 0.0, %v381
      %v383 = vpop.f32.mrb[0].mxu0
      %384 = vdwg.mxu0
      %v386 = vsel %vm136, %v254, 0
      %v389 = vsel %vm136, %v308, 0
      %391 = vmatprep.subr.mxu0 0.0
      %392 = vmatpush1.xpose.msra.mxu0 %v389
      %393 = vmatprep.subr.mxu0 0.0
      %394 = vmatpush1.xpose.msra.mxu0 0.0
      %395 = vmatprep.subr.mxu0 0.0
      %396 = vmatpush1.xpose.msra.mxu0 0.0
      %397 = vmatprep.subr.mxu0 0.0
      %398 = vmatpush1.xpose.msra.mxu0 0.0
      %399 = vmatprep.subr.mxu0 0.0
      %400 = vmatpush1.xpose.msra.mxu0 0.0
      %401 = vmatprep.subr.mxu0 0.0
      %402 = vmatpush1.xpose.msra.mxu0 0.0
      %403 = vmatprep.subr.mxu0 0.0
      %404 = vmatpush1.xpose.msra.mxu0 0.0
      %405 = vmatprep.subr.mxu0 0.0
      %406 = vmatpush1.xpose.msra.mxu0 0.0
      %407 = vmatprep.subr.mxu0 0.0
      %408 = vmatpush1.xpose.msra.mxu0 0.0
      %409 = vmatprep.subr.mxu0 0.0
      %410 = vmatpush1.xpose.msra.mxu0 0.0
      %411 = vmatprep.subr.mxu0 0.0
      %412 = vmatpush1.xpose.msra.mxu0 0.0
      %413 = vmatprep.subr.mxu0 0.0
      %414 = vmatpush1.xpose.msra.mxu0 0.0
      %415 = vmatprep.subr.mxu0 0.0
      %416 = vmatpush1.xpose.msra.mxu0 0.0
      %417 = vmatprep.subr.mxu0 0.0
      %418 = vmatpush1.xpose.msra.mxu0 0.0
      %419 = vmatprep.subr.mxu0 0.0
      %420 = vmatpush1.xpose.msra.mxu0 0.0
      %421 = vmatprep.subr.mxu0 0.0
      %422 = vmatpush1.xpose.msra.mxu0 0.0
      %423 = vmatprep.subr.mxu0 0.0
      %424 = vmatpush1.xpose.msra.mxu0 0.0
      %425 = vmatprep.subr.mxu0 0.0
      %426 = vmatpush1.xpose.msra.mxu0 0.0
      %427 = vmatprep.subr.mxu0 0.0
      %428 = vmatpush1.xpose.msra.mxu0 0.0
      %429 = vmatprep.subr.mxu0 0.0
      %430 = vmatpush1.xpose.msra.mxu0 0.0
      %431 = vmatprep.subr.mxu0 0.0
      %432 = vmatpush1.xpose.msra.mxu0 0.0
      %433 = vmatprep.subr.mxu0 0.0
      %434 = vmatpush1.xpose.msra.mxu0 0.0
      %435 = vmatprep.subr.mxu0 0.0
      %436 = vmatpush1.xpose.msra.mxu0 0.0
      %437 = vmatprep.subr.mxu0 0.0
      %438 = vmatpush1.xpose.msra.mxu0 0.0
      %439 = vmatprep.subr.mxu0 0.0
      %440 = vmatpush1.xpose.msra.mxu0 0.0
      %441 = vmatprep.subr.mxu0 0.0
      %442 = vmatpush1.xpose.msra.mxu0 0.0
      %443 = vmatprep.subr.mxu0 0.0
      %444 = vmatpush1.xpose.msra.mxu0 0.0
      %445 = vmatprep.subr.mxu0 0.0
      %446 = vmatpush1.xpose.msra.mxu0 0.0
      %447 = vmatprep.subr.mxu0 0.0
      %448 = vmatpush1.xpose.msra.mxu0 0.0
      %449 = vmatprep.subr.mxu0 0.0
      %450 = vmatpush1.xpose.msra.mxu0 0.0
      %451 = vmatprep.subr.mxu0 0.0
      %452 = vmatpush1.xpose.msra.mxu0 0.0
      %453 = vmatprep.subr.mxu0 0.0
      %454 = vmatpush1.xpose.msra.mxu0 0.0
      %455 = vmatprep.mubr.f32.mxu0 0.0
      %456 = vmatmul.mubr.f32.gmra.mrb[0].mxu0 %v386
      %v457 = vpop.f32.mrb[0].mxu0
      %v458 = vadd.f32 0.0, %v457
      %v459 = vpop.f32.mrb[0].mxu0
      %460 = vdwg.mxu0
      %v462 = vrot.slane %v30, 1
      %v465 = vsub.f32 %v382, %v30
      %v466 = vsub.f32 %v458, %v462
      %v468 = vrot.slane %v31, 7
      %v471 = vsub.f32 %v382, %v468
      %v472 = vsub.f32 %v458, %v31
      %v474 = vrot.slane %v32, 6
      %v475 = vrot.slane %v32, 7
      %v478 = vsub.f32 %v382, %v474
      %v479 = vsub.f32 %v458, %v475
      %v482 = vrot.slane %v471, 1
      %v483 = vrot.slane %v472, 1
      %v486 = vrot.slane %v478, 2
      %v487 = vrot.slane %v479, 2
      %v490 = vrot.slane %v466, 7
      %vm491 = vcmask 1041409
      %v492 = vsel %vm491, %v490, %v465
      %v493 = vrot.slane %v483, 7
      %v494 = vsel %vm491, %v493, %v482
      %v495 = vrot.slane %v487, 7
      %v496 = vsel %vm491, %v495, %v486
      %s500 = smul.u32 %s256, 6
      %s501 = scalar_lea.vmem [#allocation3], %s500
      %502 = vst.msk [vmem:[%s501] sm:$0x3] %vm81, %v492
      %503 = vst.msk [vmem:[%s501 + $0x2] sm:$0x3] %vm81, %v494
      %504 = vst.msk [vmem:[%s501 + $0x4] sm:$0x3] %vm81, %v496
      %v505 = vsel %vm303, inf, %v261
      %v506 = vsel %vm304, inf, %v262
      %507 = vst.msk [vmem:[#allocation2] sm:$0xff] %vm136, %v505
      %508 = vst.msk [vmem:[#allocation2 + $0x8] sm:$0xff] %vm136, %v506
    $region21: #{tpu_custom_call.1} parent=1 // loop_footer
      %s260 = sadd.s32 1, %s256
    $region22: #{tpu_custom_call.1} parent=1 // loop_footer_branch
      %255 = sbr.rel target = $region18
    $region23: #{tpu_custom_call.1} parent=1 // loop_exit
      _
    // Predicated region
    $region24: #{tpu_custom_call.1} parent=1 // pred_check
      _
    $region25: #{tpu_custom_call.1} parent=1 // pred_check_branch
      %510 = sbr.rel (0) target = $region27
    $region26: #{tpu_custom_call.1} parent=1 // pred_region
      %s512 = ssub.s32 768, 768
      %513 = vsyncadd [#allocation4], %s512
      %s514 = sshll.u32 [#allocation3], 4
      %s515 = int_to_ptr.vmem [resolvable:$true] %s514
      %520 = dma.vmem_to_hbm [thread:$0]  %s515, 768, %s2, [#allocation4], 32, 32, 2
    $region27: #{tpu_custom_call.1} parent=1 // pred_fallthru
      _
    // Predicated region
    $region28: #{tpu_custom_call.1} parent=1 // pred_check
      _
    $region29: #{tpu_custom_call.1} parent=1 // pred_check_branch
      %522 = sbr.rel (0) target = $region31
    $region30: #{tpu_custom_call.1} parent=1 // pred_region
      %s524 = ssub.s32 96, 96
      %525 = vsyncadd [#allocation6], %s524
      %s526 = sshll.u32 [#allocation5], 4
      %s527 = int_to_ptr.vmem [resolvable:$true] %s526
      %532 = dma.vmem_to_hbm [thread:$0]  %s527, 96, %s3, [#allocation6], 32, 32, 2
    $region31: #{tpu_custom_call.1} parent=1 // pred_fallthru
      _
    // Predicated region
    $region32: #{tpu_custom_call.1} parent=1 // pred_check
      _
    $region33: #{tpu_custom_call.1} parent=1 // pred_check_branch
      %534 = sbr.rel (0) target = $region35
    $region34: #{tpu_custom_call.1} parent=1 // pred_region
      %535 = dma.done [#allocation4], 768
    $region35: #{tpu_custom_call.1} parent=1 // pred_fallthru
      _
    // Predicated region
    $region36: #{tpu_custom_call.1} parent=1 // pred_check
      _
    $region37: #{tpu_custom_call.1} parent=1 // pred_check_branch
      %537 = sbr.rel (0) target = $region39
    $region38: #{tpu_custom_call.1} parent=1 // pred_region
      %538 = dma.done [#allocation6], 96
    $region39: #{tpu_custom_call.1} parent=1 // pred_fallthru
      _
    %539 = vsyncpa [#allocation4], 1
    %540 = vsyncpa [#allocation6], 1

</llo_original>
